<compile_context>
chip_gen: v7x
topology: tpu7x:2x2x1
jax: 0.10.0
libtpu: 0.0.40
codegen_flags: <defaults>
</compile_context>

<pallas_src>
import functools

import jax
import jax.numpy as jnp
from jax import lax
from jax.experimental import pallas as pl
from jax.experimental.pallas import tpu as pltpu


def _round_up(n, m):
    return ((n + m - 1) // m) * m


def _pick_tile_b(B, D_pad, h_chunk, x_itemsize, budget_bytes=20 * 1024 * 1024):
    """Largest batch tile (multiple of 8) whose working set fits the budget."""
    cap = max(8, _round_up(B, 8))
    # VMEM-resident weights: both W1 layouts + b1/w2 (f32).
    weights = 2 * (D_pad * 0)  # placeholder, H-dependent part folded below
    best = 8
    tb = 8
    while tb <= min(cap, 2048):
        per_tile = (
            2 * tb * D_pad * x_itemsize   # x tile, double-buffered
            + 2 * tb * D_pad * 4          # out tile (f32-ish), double-buffered
            + 4 * tb * h_chunk * 4        # z / t / s live intermediates (f32)
        )
        if per_tile + weights <= budget_bytes:
            best = tb
        tb *= 2
    return min(best, cap)


def _make_grad_kernel(n_chunks, h_chunk):
    def kernel(x_ref, w1t_ref, w1_ref, b1_ref, w2_ref, o_ref):
        # x:(TB,Dp) [matmul dtype]   w1t:(Dp,Hp)   w1:(Hp,Dp)
        # b1:(1,Hp) f32   w2:(1,Hp) f32   o:(TB,Dp)
        x = x_ref[...]

        def body(c, acc):
            h0 = pl.multiple_of(c * h_chunk, h_chunk)
            # z = x @ W1^T + b1  (W1 pre-transposed in wrapper -> no XLU xpose)
            w1t_c = w1t_ref[:, pl.ds(h0, h_chunk)]          # (Dp, Hc)
            z = jnp.dot(x, w1t_c, preferred_element_type=jnp.float32)
            z = z + b1_ref[:, pl.ds(h0, h_chunk)]           # (1,Hc) -> (TB,Hc)
            t = jnp.tanh(z)                                 # f32 on the EUP
            s = (1.0 - t * t) * w2_ref[:, pl.ds(h0, h_chunk)]
            # grad += s @ W1  (second matmul uses the (H,D) layout)
            w1_c = w1_ref[pl.ds(h0, h_chunk), :]            # (Hc, Dp)
            return acc + jnp.dot(
                s.astype(w1_c.dtype), w1_c, preferred_element_type=jnp.float32
            )

        acc0 = jnp.zeros(o_ref.shape, jnp.float32)
        acc = lax.fori_loop(0, n_chunks, body, acc0, unroll=True)
        o_ref[...] = acc.astype(o_ref.dtype)

    return kernel


@functools.partial(jax.jit, static_argnames=("matmul_dtype", "h_chunk_max"))
def gradient_wrapper_forward(x, w1, b1, w2, *, matmul_dtype=jnp.bfloat16,
                             h_chunk_max=256):
    """Pallas implementation of gradient_wrapper(space).forward(x).

    x:(B,D)  w1:(H,D)  b1:(H,)  w2:(H,)  ->  grad:(B,D), dtype of x.
    """
    B, D = x.shape
    H = w1.shape[0]
    out_dtype = x.dtype

    D_pad = _round_up(D, 128)
    H_pad = _round_up(H, 128)
    h_chunk = min(H_pad, _round_up(h_chunk_max, 128))
    n_chunks = H_pad // h_chunk

    x_itemsize = jnp.dtype(matmul_dtype).itemsize
    TB = _pick_tile_b(B, D_pad, h_chunk, x_itemsize)
    B_pad = _round_up(B, TB)
    grid_b = B_pad // TB

    # Pad (zeros are inert: padded hidden units have w2=0, padded feature
    # columns of W1 are 0) and cast matmul operands once in the wrapper.
    xf = x.astype(jnp.float32)
    w1f = w1.astype(jnp.float32)
    x_p = jnp.pad(xf, ((0, B_pad - B), (0, D_pad - D))).astype(matmul_dtype)
    w1_p = jnp.pad(w1f, ((0, H_pad - H), (0, D_pad - D)))
    w1_hd = w1_p.astype(matmul_dtype)        # (Hp, Dp) for the second matmul
    w1_dh = w1_p.T.astype(matmul_dtype)      # (Dp, Hp) for the first matmul
    b1_p = jnp.pad(b1.astype(jnp.float32), (0, H_pad - H)).reshape(1, H_pad)
    w2_p = jnp.pad(w2.astype(jnp.float32), (0, H_pad - H)).reshape(1, H_pad)

    out_itemsize = jnp.dtype(out_dtype).itemsize
    cost = pl.CostEstimate(
        flops=4 * B_pad * H_pad * D_pad,            # two matmuls
        transcendentals=B_pad * H_pad,              # tanh
        bytes_accessed=(x_p.size * x_itemsize
                        + (w1_hd.size + w1_dh.size) * x_itemsize
                        + (b1_p.size + w2_p.size) * 4
                        + B_pad * D_pad * out_itemsize),
    )

    out_p = pl.pallas_call(
        _make_grad_kernel(n_chunks, h_chunk),
        out_shape=jax.ShapeDtypeStruct((B_pad, D_pad), out_dtype),
        grid=(grid_b,),
        in_specs=[
            pl.BlockSpec((TB, D_pad), lambda i: (i, 0)),     # x: tiled on batch
            pl.BlockSpec((D_pad, H_pad), lambda i: (0, 0)),  # W1^T: resident
            pl.BlockSpec((H_pad, D_pad), lambda i: (0, 0)),  # W1:   resident
            pl.BlockSpec((1, H_pad), lambda i: (0, 0)),      # b1:   resident
            pl.BlockSpec((1, H_pad), lambda i: (0, 0)),      # w2:   resident
        ],
        out_specs=pl.BlockSpec((TB, D_pad), lambda i: (i, 0)),
        compiler_params=pltpu.CompilerParams(
            dimension_semantics=("parallel",),
            vmem_limit_bytes=32 * 1024 * 1024,
        ),
        cost_estimate=cost,
    )(x_p, w1_dh, w1_hd, b1_p, w2_p)

    return out_p[:B, :D]


def _space_scalar(x, w1, b1, w2, b2):
    """Pure-JAX reference of the `space` module: scalar potential H(x)."""
    z = x @ w1.T + b1
    return jnp.sum(jnp.tanh(z) @ w2) + b2


if __name__ == "__main__":
    B, D, H = 8, 16, 32  # small demo shapes: batch=8, features=16, hidden=32

    key = jax.random.PRNGKey(0)
    kx, kw1, kb1, kw2 = jax.random.split(key, 4)
    x = jax.random.normal(kx, (B, D), dtype=jnp.float32)
    w1 = jax.random.normal(kw1, (H, D), dtype=jnp.float32) * 0.1
    b1 = jax.random.normal(kb1, (H,), dtype=jnp.float32) * 0.1
    w2 = jax.random.normal(kw2, (H,), dtype=jnp.float32) * 0.1
    b2 = jnp.float32(0.0)

    # Reference: autodiff of the scalar potential, same semantics as
    # torch.autograd.grad(space(x), x).
    ref = jax.grad(_space_scalar)(x, w1, b1, w2, b2)

    # Pallas kernel, bf16 MXU operands / f32 accumulation (default path).
    out = jax.block_until_ready(gradient_wrapper_forward(x, w1, b1, w2))
    assert out.shape == x.shape and out.dtype == x.dtype
    assert jnp.allclose(out, ref, atol=5e-3, rtol=5e-2)

    # Pallas kernel, full f32 matmuls (tight-tolerance sanity check).
    out_f32 = jax.block_until_ready(
        gradient_wrapper_forward(x, w1, b1, w2, matmul_dtype=jnp.float32))
    assert jnp.allclose(out_f32, ref, atol=1e-5, rtol=1e-5)

    # TODO(synk): create_graph=True (differentiating *through* this gradient)
    # would need a custom_vjp around the kernel; only the forward is provided.
    print("KERNEL_OK")
</pallas_src>

<mosaic_0001>
module attributes {stable_mosaic.version = 11 : i64} {
  func.func @kernel(%arg0: i32, %arg1: memref<8x128xbf16, #tpu.memory_space<vmem>>, %arg2: memref<128x128xbf16, #tpu.memory_space<vmem>>, %arg3: memref<128x128xbf16, #tpu.memory_space<vmem>>, %arg4: memref<1x128xf32, #tpu.memory_space<vmem>>, %arg5: memref<1x128xf32, #tpu.memory_space<vmem>>, %arg6: memref<8x128xf32, #tpu.memory_space<vmem>>) attributes {dimension_semantics = [#tpu.dimension_semantics<parallel>], iteration_bounds = array<i64: 1>, scalar_prefetch = 0 : i64, scratch_operands = 0 : i64, tpu.core_type = #tpu.core_type<tc>, window_params = [{transform_indices = @transform_0, window_bounds = array<i64: 8, 128>}, {pipeline_mode = #tpu.pipeline_mode<synchronous>, transform_indices = @transform_1, window_bounds = array<i64: 128, 128>}, {pipeline_mode = #tpu.pipeline_mode<synchronous>, transform_indices = @transform_2, window_bounds = array<i64: 128, 128>}, {pipeline_mode = #tpu.pipeline_mode<synchronous>, transform_indices = @transform_3, window_bounds = array<i64: 1, 128>}, {pipeline_mode = #tpu.pipeline_mode<synchronous>, transform_indices = @transform_4, window_bounds = array<i64: 1, 128>}, {transform_indices = @transform_5, window_bounds = array<i64: 8, 128>}]} {
    %c0 = arith.constant 0 : index
    %c0_0 = arith.constant 0 : index
    %0 = vector.load %arg1[%c0, %c0_0] : memref<8x128xbf16, #tpu.memory_space<vmem>>, vector<8x128xbf16>
    %cst = arith.constant 0.000000e+00 : f32
    %1 = vector.broadcast %cst : f32 to vector<8x128xf32>
    %c0_i32 = arith.constant 0 : i32
    %c128_i32 = arith.constant 128 : i32
    %2 = arith.muli %c0_i32, %c128_i32 : i32
    %3 = tpu.assume_multiple %2, 128 : i32
    %c0_1 = arith.constant 0 : index
    %4 = arith.index_cast %3 : i32 to index
    %5 = vector.load %arg2[%c0_1, %4] : memref<128x128xbf16, #tpu.memory_space<vmem>>, vector<128x128xbf16>
    %cst_2 = arith.constant dense<0.000000e+00> : vector<8x128xf32>
    %6 = tpu.matmul %0, %5, %cst_2 {dimension_numbers = #tpu.dot_dimension_numbers<[1], [0], [0], [1], [0, 0, 1, 1], [], []>} : vector<8x128xbf16>, vector<128x128xbf16>, vector<8x128xf32> -> vector<8x128xf32>
    %c0_3 = arith.constant 0 : index
    %7 = arith.index_cast %3 : i32 to index
    %8 = vector.load %arg4[%c0_3, %7] : memref<1x128xf32, #tpu.memory_space<vmem>>, vector<1x128xf32>
    %9 = vector.broadcast %8 : vector<1x128xf32> to vector<8x128xf32>
    %10 = arith.addf %6, %9 : vector<8x128xf32>
    %11 = math.tanh %10 : vector<8x128xf32>
    %12 = arith.mulf %11, %11 : vector<8x128xf32>
    %cst_4 = arith.constant 1.000000e+00 : f32
    %13 = vector.broadcast %cst_4 : f32 to vector<8x128xf32>
    %14 = arith.subf %13, %12 : vector<8x128xf32>
    %c0_5 = arith.constant 0 : index
    %15 = arith.index_cast %3 : i32 to index
    %16 = vector.load %arg5[%c0_5, %15] : memref<1x128xf32, #tpu.memory_space<vmem>>, vector<1x128xf32>
    %17 = vector.broadcast %16 : vector<1x128xf32> to vector<8x128xf32>
    %18 = arith.mulf %14, %17 : vector<8x128xf32>
    %19 = arith.index_cast %3 : i32 to index
    %c0_6 = arith.constant 0 : index
    %20 = vector.load %arg3[%19, %c0_6] : memref<128x128xbf16, #tpu.memory_space<vmem>>, vector<128x128xbf16>
    %21 = arith.truncf %18 : vector<8x128xf32> to vector<8x128xbf16>
    %cst_7 = arith.constant dense<0.000000e+00> : vector<8x128xf32>
    %22 = tpu.matmul %21, %20, %cst_7 {dimension_numbers = #tpu.dot_dimension_numbers<[1], [0], [0], [1], [0, 0, 1, 1], [], []>} : vector<8x128xbf16>, vector<128x128xbf16>, vector<8x128xf32> -> vector<8x128xf32>
    %23 = arith.addf %1, %22 : vector<8x128xf32>
    %c1_i32 = arith.constant 1 : i32
    %c0_8 = arith.constant 0 : index
    %c0_9 = arith.constant 0 : index
    %24 = vector.load %arg6[%c0_8, %c0_9] : memref<8x128xf32, #tpu.memory_space<vmem>>, vector<8x128xf32>
    tpu.vector_store %arg6[%c0_8, %c0_9], %23 {strides = array<i32>} : memref<8x128xf32, #tpu.memory_space<vmem>>, vector<8x128xf32>,
    return
  }
  func.func @transform_0(%arg0: i32) -> (i32, i32) {
    %c0_i32 = arith.constant 0 : i32
    %c0_i32_0 = arith.constant 0 : i32
    return %arg0, %c0_i32 : i32, i32
  }
  func.func @transform_1(%arg0: i32) -> (i32, i32) {
    %c0_i32 = arith.constant 0 : i32
    %c0_i32_0 = arith.constant 0 : i32
    %c0_i32_1 = arith.constant 0 : i32
    return %c0_i32, %c0_i32_0 : i32, i32
  }
  func.func @transform_2(%arg0: i32) -> (i32, i32) {
    %c0_i32 = arith.constant 0 : i32
    %c0_i32_0 = arith.constant 0 : i32
    %c0_i32_1 = arith.constant 0 : i32
    return %c0_i32, %c0_i32_0 : i32, i32
  }
  func.func @transform_3(%arg0: i32) -> (i32, i32) {
    %c0_i32 = arith.constant 0 : i32
    %c0_i32_0 = arith.constant 0 : i32
    %c0_i32_1 = arith.constant 0 : i32
    return %c0_i32, %c0_i32_0 : i32, i32
  }
  func.func @transform_4(%arg0: i32) -> (i32, i32) {
    %c0_i32 = arith.constant 0 : i32
    %c0_i32_0 = arith.constant 0 : i32
    %c0_i32_1 = arith.constant 0 : i32
    return %c0_i32, %c0_i32_0 : i32, i32
  }
  func.func @transform_5(%arg0: i32) -> (i32, i32) {
    %c0_i32 = arith.constant 0 : i32
    %c0_i32_0 = arith.constant 0 : i32
    return %arg0, %c0_i32 : i32, i32
  }
}

</mosaic_0001>

<llo_original>
// kernel: gradient_wrapper_forward.1
$region0: #{gradient_wrapper_forward.1}
  #allocation0 [shape = 'u32[]', space=smem, size = 0x4, offset = 0x4, fixed_abs, tag = 'smem constant byte address 0x4 - core index']
  #allocation1 [shape = 'u32[144,128]{1,0:T(1,128)}', space=vmem, size = 0x12000, scoped, tag = 'internal scratch']
  %s0 = inlined_call_operand.vmem [shape: bf16[8,128], index: 0, kind: input, shape index: {}]
  %s1 = inlined_call_operand.vmem [shape: bf16[128,128], index: 1, kind: input, shape index: {}]
  %s2 = inlined_call_operand.vmem [shape: bf16[128,128], index: 2, kind: input, shape index: {}]
  %s3 = inlined_call_operand.vmem [shape: f32[1,128], index: 3, kind: input, shape index: {}]
  %s4 = inlined_call_operand.vmem [shape: f32[1,128], index: 4, kind: input, shape index: {}]
  %s5 = inlined_call_operand.hbm [shape: f32[8,128], index: 5, kind: output, shape index: {}]
  %s6 = sld [smem:[#allocation0]]
  $region30: #{gradient_wrapper_forward.1} parent=0
    _
  %s8 = ssub.s32 1, %s6
  %s9 = scalar_select 0, %s8, %s6
  $region1: #{gradient_wrapper_forward.1} parent=0
    #allocation2 [shape = 'u8[4096]{0}', space=vmem, size = 0x1000, scoped, tag = 'output window, operand 0, single buffered']
    #allocation3 [shape = 's32[1]{0}', space=sflag, size = 0x4, scoped, tag = 'scoped memory for gradient_wrapper_forward.1']
    %10 = vsyncpa [#allocation3], 0
    // Predicated region
    $region2: #{gradient_wrapper_forward.1} parent=1 // pred_check
      _
    $region3: #{gradient_wrapper_forward.1} parent=1 // pred_check_branch
      %12 = sbr.rel (0) target = $region5
    $region4: #{gradient_wrapper_forward.1} parent=1 // pred_region
      _
    $region5: #{gradient_wrapper_forward.1} parent=1 // pred_fallthru
      _
    // Predicated region
    $region6: #{gradient_wrapper_forward.1} parent=1 // pred_check
      _
    $region7: #{gradient_wrapper_forward.1} parent=1 // pred_check_branch
      %14 = sbr.rel (0) target = $region9
    $region8: #{gradient_wrapper_forward.1} parent=1 // pred_region
      _
    $region9: #{gradient_wrapper_forward.1} parent=1 // pred_fallthru
      _
    // Predicated region
    $region10: #{gradient_wrapper_forward.1} parent=1 // pred_check
      _
    $region11: #{gradient_wrapper_forward.1} parent=1 // pred_check_branch
      %16 = sbr.rel (0) target = $region13
    $region12: #{gradient_wrapper_forward.1} parent=1 // pred_region
      _
    $region13: #{gradient_wrapper_forward.1} parent=1 // pred_fallthru
      _
    // Predicated region
    $region14: #{gradient_wrapper_forward.1} parent=1 // pred_check
      _
    $region15: #{gradient_wrapper_forward.1} parent=1 // pred_check_branch
      %18 = sbr.rel (0) target = $region17
    $region16: #{gradient_wrapper_forward.1} parent=1 // pred_region
      _
    $region17: #{gradient_wrapper_forward.1} parent=1 // pred_fallthru
      _
    // Predicated region
    $region18: #{gradient_wrapper_forward.1} parent=1 // pred_check
      _
    $region19: #{gradient_wrapper_forward.1} parent=1 // pred_check_branch
      %20 = sbr.rel (0) target = $region21
    $region20: #{gradient_wrapper_forward.1} parent=1 // pred_region
      _
    $region21: #{gradient_wrapper_forward.1} parent=1 // pred_fallthru
      _
    %v22 = vld [vmem:[%s0] sm:$0xf]
    %v23 = vld [vmem:[%s1] sm:$0xf]
    %v24 = vld [vmem:[%s1 + $0x4] sm:$0xf]
    %v25 = vld [vmem:[%s1 + $0x8] sm:$0xf]
    %v26 = vld [vmem:[%s1 + $0xc] sm:$0xf]
    %v27 = vld [vmem:[%s1 + $0x10] sm:$0xf]
    %v28 = vld [vmem:[%s1 + $0x14] sm:$0xf]
    %v29 = vld [vmem:[%s1 + $0x18] sm:$0xf]
    %v30 = vld [vmem:[%s1 + $0x1c] sm:$0xf]
    %v31 = vld [vmem:[%s1 + $0x20] sm:$0xf]
    %v32 = vld [vmem:[%s1 + $0x24] sm:$0xf]
    %v33 = vld [vmem:[%s1 + $0x28] sm:$0xf]
    %v34 = vld [vmem:[%s1 + $0x2c] sm:$0xf]
    %v35 = vld [vmem:[%s1 + $0x30] sm:$0xf]
    %v36 = vld [vmem:[%s1 + $0x34] sm:$0xf]
    %v37 = vld [vmem:[%s1 + $0x38] sm:$0xf]
    %v38 = vld [vmem:[%s1 + $0x3c] sm:$0xf]
    %v39 = vld [vmem:[%s3] sm:$0x1]
    %v41 = vlaneseq
    %v42 = vshrl.u32 %v41, 7
    %v43 = vsub.s32 0, %v42
    %v44 = vrot.slane %v39, %v43
    %v62 = vunpack.c.l.b16 %v23
    %v63 = vunpack.c.l.b16 %v24
    %v64 = vunpack.c.l.b16 %v25
    %v65 = vunpack.c.l.b16 %v26
    %v66 = vunpack.c.l.b16 %v27
    %v67 = vunpack.c.l.b16 %v28
    %v68 = vunpack.c.l.b16 %v29
    %v69 = vunpack.c.l.b16 %v30
    %v70 = vunpack.c.l.b16 %v31
    %v71 = vunpack.c.l.b16 %v32
    %v72 = vunpack.c.l.b16 %v33
    %v73 = vunpack.c.l.b16 %v34
    %v74 = vunpack.c.l.b16 %v35
    %v75 = vunpack.c.l.b16 %v36
    %v76 = vunpack.c.l.b16 %v37
    %v77 = vunpack.c.l.b16 %v38
    %v78 = vpack.c.b16 %v63, %v62
    %v79 = vpack.c.b16 %v65, %v64
    %v80 = vpack.c.b16 %v67, %v66
    %v81 = vpack.c.b16 %v69, %v68
    %v82 = vpack.c.b16 %v71, %v70
    %v83 = vpack.c.b16 %v73, %v72
    %v84 = vpack.c.b16 %v75, %v74
    %v85 = vpack.c.b16 %v77, %v76
    %94 = vmatprep.subr.bf16.mxu0 0
    %95 = vmatpush1.bf16.msra.mxu0 %v78
    %96 = vmatprep.subr.bf16.mxu0 0
    %97 = vmatpush1.bf16.msra.mxu0 %v79
    %98 = vmatprep.subr.bf16.mxu0 0
    %99 = vmatpush1.bf16.msra.mxu0 %v80
    %100 = vmatprep.subr.bf16.mxu0 0
    %101 = vmatpush1.bf16.msra.mxu0 %v81
    %102 = vmatprep.subr.bf16.mxu0 0
    %103 = vmatpush1.bf16.msra.mxu0 %v82
    %104 = vmatprep.subr.bf16.mxu0 0
    %105 = vmatpush1.bf16.msra.mxu0 %v83
    %106 = vmatprep.subr.bf16.mxu0 0
    %107 = vmatpush1.bf16.msra.mxu0 %v84
    %108 = vmatprep.subr.bf16.mxu0 0
    %109 = vmatpush1.bf16.msra.mxu0 %v85
    %110 = vmatprep.subr.bf16.mxu0 0
    %111 = vmatpush1.bf16.msra.mxu0 0
    %112 = vmatprep.subr.bf16.mxu0 0
    %113 = vmatpush1.bf16.msra.mxu0 0
    %114 = vmatprep.subr.bf16.mxu0 0
    %115 = vmatpush1.bf16.msra.mxu0 0
    %116 = vmatprep.subr.bf16.mxu0 0
    %117 = vmatpush1.bf16.msra.mxu0 0
    %118 = vmatprep.subr.bf16.mxu0 0
    %119 = vmatpush1.bf16.msra.mxu0 0
    %120 = vmatprep.subr.bf16.mxu0 0
    %121 = vmatpush1.bf16.msra.mxu0 0
    %122 = vmatprep.subr.bf16.mxu0 0
    %123 = vmatpush1.bf16.msra.mxu0 0
    %124 = vmatprep.subr.bf16.mxu0 0
    %125 = vmatpush1.bf16.msra.mxu0 0
    %126 = vmatprep.mubr.bf16.mxu0 0
    %127 = vmatmul.mubr.bf16.gmra.mrb[0].mxu0 %v22
    %v128 = vpop.f32.mrb[0].mxu0
    %v129 = vadd.f32 %v44, %v128
    %v130 = vpop.f32.mrb[0].mxu0
    %v131 = vpop.f32.mrb[0].mxu0
    %v132 = vpop.f32.mrb[0].mxu0
    %133 = vdwg.mxu0
    %v134 = vtanh.pop %v129
    %v135 = vmul.f32 %v134, %v134
    %v136 = vsub.f32 1.0, %v135
    %v137 = vld [vmem:[%s4] sm:$0x1]
    %v139 = vlaneseq
    %v140 = vshrl.u32 %v139, 7
    %v141 = vsub.s32 0, %v140
    %v142 = vrot.slane %v137, %v141
    %v144 = vmul.f32 %v136, %v142
    %v145 = vld [vmem:[%s2] sm:$0xf]
    %v146 = vld [vmem:[%s2 + $0x4] sm:$0xf]
    %v147 = vld [vmem:[%s2 + $0x8] sm:$0xf]
    %v148 = vld [vmem:[%s2 + $0xc] sm:$0xf]
    %v149 = vld [vmem:[%s2 + $0x10] sm:$0xf]
    %v150 = vld [vmem:[%s2 + $0x14] sm:$0xf]
    %v151 = vld [vmem:[%s2 + $0x18] sm:$0xf]
    %v152 = vld [vmem:[%s2 + $0x1c] sm:$0xf]
    %v153 = vld [vmem:[%s2 + $0x20] sm:$0xf]
    %v154 = vld [vmem:[%s2 + $0x24] sm:$0xf]
    %v155 = vld [vmem:[%s2 + $0x28] sm:$0xf]
    %v156 = vld [vmem:[%s2 + $0x2c] sm:$0xf]
    %v157 = vld [vmem:[%s2 + $0x30] sm:$0xf]
    %v158 = vld [vmem:[%s2 + $0x34] sm:$0xf]
    %v159 = vld [vmem:[%s2 + $0x38] sm:$0xf]
    %v160 = vld [vmem:[%s2 + $0x3c] sm:$0xf]
    %v161 = vpack.c.bf16 %v144, %v144
    %v178 = vunpack.c.l.b16 %v145
    %v179 = vunpack.c.l.b16 %v146
    %v180 = vunpack.c.l.b16 %v147
    %v181 = vunpack.c.l.b16 %v148
    %v182 = vunpack.c.l.b16 %v149
    %v183 = vunpack.c.l.b16 %v150
    %v184 = vunpack.c.l.b16 %v151
    %v185 = vunpack.c.l.b16 %v152
    %v186 = vunpack.c.l.b16 %v153
    %v187 = vunpack.c.l.b16 %v154
    %v188 = vunpack.c.l.b16 %v155
    %v189 = vunpack.c.l.b16 %v156
    %v190 = vunpack.c.l.b16 %v157
    %v191 = vunpack.c.l.b16 %v158
    %v192 = vunpack.c.l.b16 %v159
    %v193 = vunpack.c.l.b16 %v160
    %v194 = vpack.c.b16 %v179, %v178
    %v195 = vpack.c.b16 %v181, %v180
    %v196 = vpack.c.b16 %v183, %v182
    %v197 = vpack.c.b16 %v185, %v184
    %v198 = vpack.c.b16 %v187, %v186
    %v199 = vpack.c.b16 %v189, %v188
    %v200 = vpack.c.b16 %v191, %v190
    %v201 = vpack.c.b16 %v193, %v192
    %210 = vmatprep.subr.bf16.mxu0 0
    %211 = vmatpush1.bf16.msra.mxu0 %v194
    %212 = vmatprep.subr.bf16.mxu0 0
    %213 = vmatpush1.bf16.msra.mxu0 %v195
    %214 = vmatprep.subr.bf16.mxu0 0
    %215 = vmatpush1.bf16.msra.mxu0 %v196
    %216 = vmatprep.subr.bf16.mxu0 0
    %217 = vmatpush1.bf16.msra.mxu0 %v197
    %218 = vmatprep.subr.bf16.mxu0 0
    %219 = vmatpush1.bf16.msra.mxu0 %v198
    %220 = vmatprep.subr.bf16.mxu0 0
    %221 = vmatpush1.bf16.msra.mxu0 %v199
    %222 = vmatprep.subr.bf16.mxu0 0
    %223 = vmatpush1.bf16.msra.mxu0 %v200
    %224 = vmatprep.subr.bf16.mxu0 0
    %225 = vmatpush1.bf16.msra.mxu0 %v201
    %226 = vmatprep.subr.bf16.mxu0 0
    %227 = vmatpush1.bf16.msra.mxu0 0
    %228 = vmatprep.subr.bf16.mxu0 0
    %229 = vmatpush1.bf16.msra.mxu0 0
    %230 = vmatprep.subr.bf16.mxu0 0
    %231 = vmatpush1.bf16.msra.mxu0 0
    %232 = vmatprep.subr.bf16.mxu0 0
    %233 = vmatpush1.bf16.msra.mxu0 0
    %234 = vmatprep.subr.bf16.mxu0 0
    %235 = vmatpush1.bf16.msra.mxu0 0
    %236 = vmatprep.subr.bf16.mxu0 0
    %237 = vmatpush1.bf16.msra.mxu0 0
    %238 = vmatprep.subr.bf16.mxu0 0
    %239 = vmatpush1.bf16.msra.mxu0 0
    %240 = vmatprep.subr.bf16.mxu0 0
    %241 = vmatpush1.bf16.msra.mxu0 0
    %242 = vmatprep.mubr.bf16.mxu0 0
    %243 = vmatmul.mubr.bf16.gmra.mrb[0].mxu0 %v161
    %v244 = vpop.f32.mrb[0].mxu0
    %v245 = vadd.f32 0.0, %v244
    %v246 = vpop.f32.mrb[0].mxu0
    %v247 = vpop.f32.mrb[0].mxu0
    %v248 = vpop.f32.mrb[0].mxu0
    %249 = vdwg.mxu0
    %250 = vst [vmem:[#allocation2] sm:$0xff] %v245
    // Predicated region
    $region22: #{gradient_wrapper_forward.1} parent=1 // pred_check
      _
    $region23: #{gradient_wrapper_forward.1} parent=1 // pred_check_branch
      %252 = sbr.rel (0) target = $region25
    $region24: #{gradient_wrapper_forward.1} parent=1 // pred_region
      %s254 = ssub.s32 128, 128
      %255 = vsyncadd [#allocation3], %s254
      %s257 = sshll.u32 [#allocation2], 4
      %s258 = int_to_ptr.vmem [resolvable:$true] %s257
      %260 = dma.vmem_to_hbm [thread:$0]  %s258, 128, %s5, [#allocation3]
    $region25: #{gradient_wrapper_forward.1} parent=1 // pred_fallthru
      _
    // Predicated region
    $region26: #{gradient_wrapper_forward.1} parent=1 // pred_check
      _
    $region27: #{gradient_wrapper_forward.1} parent=1 // pred_check_branch
      %262 = sbr.rel (0) target = $region29
    $region28: #{gradient_wrapper_forward.1} parent=1 // pred_region
      %263 = dma.done [#allocation3], 128
    $region29: #{gradient_wrapper_forward.1} parent=1 // pred_fallthru
      _
    %264 = vsyncpa [#allocation3], 1

</llo_original>
